<compile_context>
chip_gen: v5e
topology: v5e:2x2
jax: 0.10.0
libtpu: 0.0.40
codegen_flags: <defaults>
</compile_context>

<pallas_src>
import functools

import jax
import jax.numpy as jnp
from jax.experimental import pallas as pl
from jax.experimental.pallas import tpu as pltpu

LANES = 128
MAX_TILE_M = 2048  # rows per block -> 1 MiB f32 per input block


def _huber_partial_kernel(*refs, d, tile_m, m_valid, steps, needs_mask,
                          has_target):
    if has_target:
        x_ref, y_ref, o_ref = refs
    else:
        x_ref, o_ref = refs
        y_ref = None

    j = pl.program_id(0)  # core ("parallel") axis
    i = pl.program_id(1)  # reduction ("arbitrary") axis

    @pl.when(i == 0)
    def _():
        o_ref[...] = jnp.zeros_like(o_ref)

    x = x_ref[...].astype(jnp.float32)
    if has_target:
        # forward(x, y): residual is y - x
        x = y_ref[...].astype(jnp.float32) - x

    abs_x = jnp.abs(x)
    loss = jnp.where(abs_x < d, 0.5 * x * x, d * (abs_x - 0.5 * d))

    if needs_mask:
        # Mask rows past the valid extent (covers ragged last block and any
        # clamped/duplicated block reads). Column padding is zeros and
        # huber(0) == 0, so it needs no mask.
        row0 = (j * steps + i) * tile_m
        rows = row0 + jax.lax.broadcasted_iota(jnp.int32, (tile_m, LANES), 0)
        loss = jnp.where(rows < m_valid, loss, 0.0)

    # Elementwise (VALU-only) accumulation into the resident (8,128) block.
    o_ref[...] += loss.reshape(-1, 8, LANES).sum(axis=0)


def _to_slab(a):
    """Flatten to (rows, 128); zero-copy when numel % 128 == 0."""
    flat = a.reshape(-1)
    n = flat.shape[0]
    rem = n % LANES
    if rem:
        # TODO(synk): tail pad copies the array; only taken when numel % 128 != 0.
        flat = jnp.pad(flat, (0, LANES - rem))
    return flat.reshape(-1, LANES), n


def huber_loss(x, y=None, *, d=1.0):
    """HuberLoss with Reduction.MEAN, l2_dim=None. Returns a scalar float32."""
    x_slab, count = _to_slab(x)
    has_target = y is not None
    operands = [x_slab]
    if has_target:
        y_slab, count_y = _to_slab(y)
        assert count_y == count, "x and y must have the same number of elements"
        operands.append(y_slab)

    m = x_slab.shape[0]                          # valid rows
    tile_m = min(MAX_TILE_M, pl.cdiv(m, 8) * 8)  # sublane-aligned block rows
    n_blocks = pl.cdiv(m, tile_m)
    ncores = 2 if n_blocks >= 2 else 1           # engage both TCs on v7x
    steps = pl.cdiv(n_blocks, ncores)
    needs_mask = (ncores * steps * tile_m != m)
    last_block = n_blocks - 1

    def in_map(j, i):
        # Clamp so a trailing logical block never indexes past the slab;
        # the in-kernel mask zeroes any duplicated/ragged rows.
        return (jnp.minimum(j * steps + i, last_block), 0)

    in_spec = pl.BlockSpec((tile_m, LANES), in_map)
    out_spec = pl.BlockSpec((None, 8, LANES), lambda j, i: (j, 0, 0))

    kernel = functools.partial(
        _huber_partial_kernel,
        d=float(d),
        tile_m=tile_m,
        m_valid=m,
        steps=steps,
        needs_mask=needs_mask,
        has_target=has_target,
    )

    partials = pl.pallas_call(
        kernel,
        out_shape=jax.ShapeDtypeStruct((ncores, 8, LANES), jnp.float32),
        grid_spec=pl.GridSpec(
            grid=(ncores, steps),
            in_specs=[in_spec] * len(operands),
            out_specs=out_spec,
        ),
        compiler_params=pltpu.CompilerParams(
            dimension_semantics=("parallel", "arbitrary"),
        ),
    )(*operands)

    # Final tiny cross-lane reduce + mean in the wrapper (lane-dense output).
    return jnp.sum(partials) / jnp.float32(count)


def _ref(v, d=1.0):
    a = jnp.abs(v)
    l = jnp.where(a < d, 0.5 * v * v, d * (a - 0.5 * d))
    return jnp.mean(l)


if __name__ == "__main__":
    key = jax.random.PRNGKey(0)
    kx, ky, k2, k3, k4 = jax.random.split(key, 5)

    # NCHW-shaped inputs consistent with a conv-style pipeline.
    x = jax.random.normal(kx, (2, 4, 16, 16), dtype=jnp.float32) * 2.0
    y = jax.random.normal(ky, (2, 4, 16, 16), dtype=jnp.float32) * 2.0

    # prediction-only form: huber(x).mean()
    out1 = jax.block_until_ready(huber_loss(x))
    # residual form: huber(y - x).mean()
    out2 = jax.block_until_ready(huber_loss(x, y))

    assert jnp.allclose(out1, _ref(x), rtol=1e-5, atol=1e-5)
    assert jnp.allclose(out2, _ref(y - x), rtol=1e-5, atol=1e-5)

    # Ragged shape (numel % 128 != 0) -> exercises in-kernel row mask.
    xr = jax.random.normal(k2, (3, 5, 17, 19), dtype=jnp.float32) * 2.0
    out3 = jax.block_until_ready(huber_loss(xr))
    assert jnp.allclose(out3, _ref(xr), rtol=1e-5, atol=1e-5)

    # Larger input -> exercises multiple blocks, 2-core grid split and the
    # clamped trailing block path.
    xl = jax.random.normal(k3, (2, 4, 130, 256), dtype=jnp.float32) * 2.0
    yl = jax.random.normal(k4, (2, 4, 130, 256), dtype=jnp.float32) * 2.0
    out4 = jax.block_until_ready(huber_loss(xl, yl))
    assert jnp.allclose(out4, _ref(yl - xl), rtol=1e-5, atol=1e-5)

    print("KERNEL_OK")
</pallas_src>

<mosaic_0001>
module attributes {stable_mosaic.version = 11 : i64} {
  func.func @_huber_partial_kernel(%arg0: i32, %arg1: i32, %arg2: memref<16x128xf32, #tpu.memory_space<vmem>>, %arg3: memref<1x8x128xf32, #tpu.memory_space<vmem>>) attributes {dimension_semantics = [#tpu.dimension_semantics<parallel>, #tpu.dimension_semantics<arbitrary>], iteration_bounds = array<i64: 1, 1>, scalar_prefetch = 0 : i64, scratch_operands = 0 : i64, tpu.core_type = #tpu.core_type<tc>, window_params = [{transform_indices = @transform_0, window_bounds = array<i64: 16, 128>}, {transform_indices = @transform_1, window_bounds = array<i64: 1, 8, 128>}]} {
    %c0_i32 = arith.constant 0 : i32
    %0 = arith.cmpi eq, %arg1, %c0_i32 : i32
    %1 = arith.extui %0 : i1 to i32
    %c0_i32_0 = arith.constant 0 : i32
    %2 = arith.cmpi ne, %1, %c0_i32_0 : i32
    scf.if %2 {
      %cst_12 = arith.constant 0.000000e+00 : f32
      %23 = vector.broadcast %cst_12 : f32 to vector<8x128xf32>
      %c0_13 = arith.constant 0 : index
      %c0_14 = arith.constant 0 : index
      %c0_15 = arith.constant 0 : index
      %24 = vector.load %arg3[%c0_13, %c0_14, %c0_15] : memref<1x8x128xf32, #tpu.memory_space<vmem>>, vector<1x8x128xf32>
      %25 = vector.shape_cast %24 : vector<1x8x128xf32> to vector<8x128xf32>
      %26 = vector.shape_cast %23 : vector<8x128xf32> to vector<1x8x128xf32>
      tpu.vector_store %arg3[%c0_13, %c0_14, %c0_15], %26 {strides = array<i32>} : memref<1x8x128xf32, #tpu.memory_space<vmem>>, vector<1x8x128xf32>,
    } else {
    }
    %c0 = arith.constant 0 : index
    %c0_1 = arith.constant 0 : index
    %3 = vector.load %arg2[%c0, %c0_1] : memref<16x128xf32, #tpu.memory_space<vmem>>, vector<16x128xf32>
    %4 = math.absf %3 : vector<16x128xf32>
    %cst = arith.constant 1.000000e+00 : f32
    %5 = vector.broadcast %cst : f32 to vector<16x128xf32>
    %6 = arith.cmpf olt, %4, %5 : vector<16x128xf32>
    %cst_2 = arith.constant 5.000000e-01 : f32
    %7 = vector.broadcast %cst_2 : f32 to vector<16x128xf32>
    %8 = arith.mulf %7, %3 : vector<16x128xf32>
    %9 = arith.mulf %8, %3 : vector<16x128xf32>
    %cst_3 = arith.constant 5.000000e-01 : f32
    %10 = vector.broadcast %cst_3 : f32 to vector<16x128xf32>
    %11 = arith.subf %4, %10 : vector<16x128xf32>
    %cst_4 = arith.constant 1.000000e+00 : f32
    %12 = vector.broadcast %cst_4 : f32 to vector<16x128xf32>
    %13 = arith.mulf %12, %11 : vector<16x128xf32>
    %14 = arith.select %6, %9, %13 : vector<16x128xi1>, vector<16x128xf32>
    %c0_5 = arith.constant 0 : index
    %c0_6 = arith.constant 0 : index
    %c0_7 = arith.constant 0 : index
    %15 = vector.load %arg3[%c0_5, %c0_6, %c0_7] : memref<1x8x128xf32, #tpu.memory_space<vmem>>, vector<1x8x128xf32>
    %16 = vector.shape_cast %15 : vector<1x8x128xf32> to vector<8x128xf32>
    %17 = vector.shape_cast %14 : vector<16x128xf32> to vector<2x8x128xf32>
    %cst_8 = arith.constant dense<0.000000e+00> : vector<8x128xf32>
    %18 = vector.multi_reduction <add>, %17, %cst_8 [0] : vector<2x8x128xf32> to vector<8x128xf32>
    %19 = arith.addf %16, %18 : vector<8x128xf32>
    %c0_9 = arith.constant 0 : index
    %c0_10 = arith.constant 0 : index
    %c0_11 = arith.constant 0 : index
    %20 = vector.load %arg3[%c0_9, %c0_10, %c0_11] : memref<1x8x128xf32, #tpu.memory_space<vmem>>, vector<1x8x128xf32>
    %21 = vector.shape_cast %20 : vector<1x8x128xf32> to vector<8x128xf32>
    %22 = vector.shape_cast %19 : vector<8x128xf32> to vector<1x8x128xf32>
    tpu.vector_store %arg3[%c0_9, %c0_10, %c0_11], %22 {strides = array<i32>} : memref<1x8x128xf32, #tpu.memory_space<vmem>>, vector<1x8x128xf32>,
    return
  }
  func.func @transform_0(%arg0: i32, %arg1: i32) -> (i32, i32) {
    %c1_i32 = arith.constant 1 : i32
    %0 = arith.muli %arg0, %c1_i32 : i32
    %1 = arith.addi %0, %arg1 : i32
    %c0_i32 = arith.constant 0 : i32
    %2 = arith.minsi %1, %c0_i32 : i32
    %c0_i32_0 = arith.constant 0 : i32
    %c0_i32_1 = arith.constant 0 : i32
    return %2, %c0_i32_0 : i32, i32
  }
  func.func @transform_1(%arg0: i32, %arg1: i32) -> (i32, i32, i32) {
    %c0_i32 = arith.constant 0 : i32
    %c0_i32_0 = arith.constant 0 : i32
    %c0_i32_1 = arith.constant 0 : i32
    return %arg0, %c0_i32, %c0_i32_0 : i32, i32, i32
  }
}

</mosaic_0001>

<llo_original>
// kernel: tpu_custom_call.1
$region0: #{tpu_custom_call.1}
  #allocation0 [shape = 'u32[]', space=smem, size = 0x4, offset = 0x4, fixed_abs, tag = 'smem constant byte address 0x4 - core index']
  #allocation1 [shape = 'u32[72,128]{1,0:T(1,128)}', space=vmem, size = 0x9000, scoped, tag = 'internal scratch']
  %s0 = inlined_call_operand.hbm [shape: f32[16,128], index: 0, kind: input, shape index: {}]
  %s1 = inlined_call_operand.hbm [shape: f32[1,8,128], index: 1, kind: output, shape index: {}]
  %s2 = sld [smem:[#allocation0]]
  $region22: #{tpu_custom_call.1} parent=0
    _
  %s4 = ssub.s32 1, %s2
  %s5 = scalar_select 0, %s4, %s2
  $region1: #{tpu_custom_call.1} parent=0
    #allocation2 [shape = 'u8[8192]{0}', space=vmem, size = 0x2000, scoped, tag = 'input window, operand 0, single buffered']
    #allocation3 [shape = 's32[1]{0}', space=sflag, size = 0x4, scoped, tag = 'scoped memory for tpu_custom_call.1']
    #allocation4 [shape = 's32[1]{0}', space=sflag, size = 0x4, scoped, tag = 'scoped memory for tpu_custom_call.1']
    #allocation5 [shape = 'u8[4096]{0}', space=vmem, size = 0x1000, scoped, tag = 'output window, operand 0, single buffered']
    %6 = vsyncpa [#allocation3], 0
    %7 = vsyncpa [#allocation4], 0
    // Predicated region
    $region2: #{tpu_custom_call.1} parent=1 // pred_check
      _
    $region3: #{tpu_custom_call.1} parent=1 // pred_check_branch
      %9 = sbr.rel (0) target = $region5
    $region4: #{tpu_custom_call.1} parent=1 // pred_region
      %s10 = sadd.s32 0, 0
      %p11 = scmp.lt.s32.totalorder %s10, 0
      %s12 = scalar_select %p11, %s10, 0
      %s13 = smul.u32 2, %s12
      %15 = vsyncadd [#allocation3], 0
      %s16 = smul.addr %s13, 8
      %s17 = scalar_lea.hbm %s0, %s16
      %s18 = sshll.u32 %s17, 4
      %s19 = int_to_ptr.hbm [resolvable:$true] %s18
      %s20 = sshll.u32 [#allocation2], 4
      %s21 = int_to_ptr.vmem [resolvable:$true] %s20
      %26 = dma.hbm_to_vmem [thread:$0]  %s19, 256, %s21, [#allocation3], 128, 128, 8
    $region5: #{tpu_custom_call.1} parent=1 // pred_fallthru
      _
    // Predicated region
    $region6: #{tpu_custom_call.1} parent=1 // pred_check
      _
    $region7: #{tpu_custom_call.1} parent=1 // pred_check_branch
      %28 = sbr.rel (0) target = $region9
    $region8: #{tpu_custom_call.1} parent=1 // pred_region
      %30 = dma.done [#allocation3], 256
    $region9: #{tpu_custom_call.1} parent=1 // pred_fallthru
      _
    %s31 = sadd.s32 0, 0
    %p32 = scmp.lt.s32.totalorder %s31, 0
    %s33 = scalar_select %p32, %s31, 0
    %s34 = smul.u32 2, %s33
    %p35 = scmp.eq.s32.totalorder 0, 0
    // Predicated region
    $region10: #{tpu_custom_call.1} parent=1 // pred_check
      %p36 = pneg %p35
    $region11: #{tpu_custom_call.1} parent=1 // pred_check_branch
      %38 = sbr.rel (%p36) target = $region13
    $region12: #{tpu_custom_call.1} parent=1 // pred_region
      %39 = vst [vmem:[#allocation5] sm:$0xff] 0.0
    $region13: #{tpu_custom_call.1} parent=1 // pred_fallthru
      _
    %v40 = vld [vmem:[#allocation2] sm:$0xff]
    %v41 = vld [vmem:[#allocation2 + $0x8] sm:$0xff]
    %v42 = vand.u32 2147483647, %v40
    %v43 = vand.u32 2147483647, %v41
    %vm44 = vcmp.lt.f32.partialorder %v42, 1.0
    %vm45 = vcmp.lt.f32.partialorder %v43, 1.0
    %v46 = vmul.f32 %v40, 0.5
    %v47 = vmul.f32 %v41, 0.5
    %v48 = vmul.f32 %v46, %v40
    %v49 = vmul.f32 %v47, %v41
    %v50 = vsub.f32 %v42, 0.5
    %v51 = vsub.f32 %v43, 0.5
    %v52 = vsel %vm44, %v48, %v50
    %v53 = vsel %vm45, %v49, %v51
    %v54 = vld [vmem:[#allocation5] sm:$0xff]
    %v55 = vadd.f32 %v52, %v53
    %v56 = vadd.f32 %v54, %v55
    %57 = vst [vmem:[#allocation5] sm:$0xff] %v56
    // Predicated region
    $region14: #{tpu_custom_call.1} parent=1 // pred_check
      _
    $region15: #{tpu_custom_call.1} parent=1 // pred_check_branch
      %59 = sbr.rel (0) target = $region17
    $region16: #{tpu_custom_call.1} parent=1 // pred_region
      %61 = vsyncadd [#allocation4], 0
      %s63 = sshll.u32 [#allocation5], 4
      %s64 = int_to_ptr.vmem [resolvable:$true] %s63
      %s65 = sshll.u32 %s1, 4
      %s66 = int_to_ptr.hbm [resolvable:$true] %s65
      %68 = dma.vmem_to_hbm [thread:$0]  %s64, 128, %s66, [#allocation4]
    $region17: #{tpu_custom_call.1} parent=1 // pred_fallthru
      _
    // Predicated region
    $region18: #{tpu_custom_call.1} parent=1 // pred_check
      _
    $region19: #{tpu_custom_call.1} parent=1 // pred_check_branch
      %70 = sbr.rel (0) target = $region21
    $region20: #{tpu_custom_call.1} parent=1 // pred_region
      %72 = dma.done [#allocation4], 128
    $region21: #{tpu_custom_call.1} parent=1 // pred_fallthru
      _
    %73 = vsyncpa [#allocation3], 1
    %74 = vsyncpa [#allocation4], 1

</llo_original>
